<compile_context>
chip_gen: v7x
topology: tpu7x:2x2x1
jax: 0.10.0
libtpu: 0.0.40
codegen_flags: <defaults>
</compile_context>

<pallas_src>
import jax
import jax.numpy as jnp
from jax.experimental import pallas as pl
from jax.experimental.pallas import tpu as pltpu

BN_EPS = 1e-5
LN_EPS = 1e-5
L2_EPS = 1e-12

# ---------------- model config (small, consistent with the module) ----------
BATCH = 8
USER_CAT_DIMS = {"age_bucket": 10, "gender": 3}     # emb dims: 5, 2
ITEM_CAT_DIMS = {"category": 20, "brand": 8}        # emb dims: 10, 4
USER_NUM_DIM = 4
ITEM_NUM_DIM = 6
EMBEDDING_DIM = 32                                  # divisible by 8 heads
HIDDEN_LAYERS = [64, 32]
TEMPERATURE = 0.1
NUM_HEADS = 8


def _emb_dim(vocab):
    return min(50, (vocab + 1) // 2)


USER_CAT_TOTAL = sum(_emb_dim(v) for v in USER_CAT_DIMS.values())   # 7
ITEM_CAT_TOTAL = sum(_emb_dim(v) for v in ITEM_CAT_DIMS.values())   # 14
USER_IN_DIM = USER_CAT_TOTAL + USER_NUM_DIM                          # 11
ITEM_IN_DIM = ITEM_CAT_TOTAL + ITEM_NUM_DIM                          # 20

H1, H2 = HIDDEN_LAYERS
E = EMBEDDING_DIM

# ---- packed-parameter layout ----
ITEM_IN_PAD = 32            # item features zero-padded 20 -> 32 (exact: pad rows of W1 are 0)
SLAB_COLS = 64              # widest weight (H1 = 2E = 64)
R_W1, R_W2, R_W3, R_AT = 0, 32, 96, 128   # row offsets, all multiples of 16 (bf16 sublane pack)
SLAB_ROWS = 160
VP_ROWS = 8


def _round_up(x, m):
    return ((x + m - 1) // m) * m


# ------------------------------ Pallas kernel -------------------------------
def _item_path_kernel(x_ref, ws_ref, vp_ref, out_ref):
    """Item tower (BN folded) -> LN -> L2 -> fused double cross-attn -> scaled dot.

    x_ref : (block_b, 32) f32 item features (cols 20:32 are zero padding)
    ws_ref: (160, 64) bf16 weight slab  [W1 | W2 | W3 | A_cat]
    vp_ref: (8, 64)  f32 packed vectors [b1, b2, b3, ln_g, ln_b, attn_bias(2E), -, -]
    out_ref: (1, block_b) f32 lane-dense similarity row
    """
    x = x_ref[...].astype(jnp.bfloat16)

    # Linear1 (+ folded BN1) -> ReLU          (Dropout is identity at inference.)
    h = jnp.dot(x, ws_ref[R_W1:R_W1 + ITEM_IN_PAD, 0:H1],
                preferred_element_type=jnp.float32)
    h = jnp.maximum(h + vp_ref[0:1, 0:H1], 0.0)

    # Linear2 (+ folded BN2) -> ReLU
    h = jnp.dot(h.astype(jnp.bfloat16), ws_ref[R_W2:R_W2 + H1, 0:H2],
                preferred_element_type=jnp.float32)
    h = jnp.maximum(h + vp_ref[1:2, 0:H2], 0.0)

    # Linear3 -> LayerNorm
    z = jnp.dot(h.astype(jnp.bfloat16), ws_ref[R_W3:R_W3 + H2, 0:E],
                preferred_element_type=jnp.float32) + vp_ref[2:3, 0:E]
    mu = jnp.mean(z, axis=-1, keepdims=True)
    zc = z - mu
    var = jnp.mean(zc * zc, axis=-1, keepdims=True)
    z = zc * jax.lax.rsqrt(var + LN_EPS) * vp_ref[3:4, 0:E] + vp_ref[4:5, 0:E]

    # F.normalize(p=2, dim=1): x / max(||x||, eps) == x * rsqrt(max(||x||^2, eps^2))
    ss = jnp.sum(z * z, axis=-1, keepdims=True)
    i_emb = z * jax.lax.rsqrt(jnp.maximum(ss, L2_EPS * L2_EPS))

    # Both seq-1 cross attentions fused into ONE matmul:
    #   cols 0:E   -> u_att = i_emb @ (Wv_u Wo_u) + b_u
    #   cols E:2E  -> i_att/T = i_emb @ (Wv_u Wo_u Wv_i Wo_i)/T + (b_u Wv_i Wo_i + b_i)/T
    att = jnp.dot(i_emb.astype(jnp.bfloat16), ws_ref[R_AT:R_AT + E, 0:2 * E],
                  preferred_element_type=jnp.float32) + vp_ref[5:6, 0:2 * E]
    u_att = att[:, 0:E]
    i_att = att[:, E:2 * E]                     # already scaled by 1/temperature

    sim = jnp.sum(u_att * i_att, axis=-1)       # (block_b,)
    out_ref[...] = sim.reshape(1, -1)           # lane-dense row (sublane->lane via XLU)


def two_tower_pallas(user_feat, item_feat, kp):
    """Fused forward pass.  user_feat is algebraically dead (see header note)."""
    del user_feat  # does not influence the output of the original forward pass
    B = item_feat.shape[0]
    B8 = _round_up(B, 8)
    if B8 <= 512:
        block_b = B8                             # single step: launch overhead dominates
    else:
        # >= 2 grid steps so both v7x TensorCores engage; multiple of 128 lanes for the
        # lane-dense output row; capped at 1024 to amortize per-step overhead on v5e/v6e.
        block_b = min(1024, _round_up(pl.cdiv(B8, 2), 128))
    Bp = _round_up(B8, block_b)
    grid = Bp // block_b

    x = item_feat.astype(jnp.float32)
    x = jnp.pad(x, ((0, Bp - B), (0, ITEM_IN_PAD - x.shape[1])))

    flops = 2 * Bp * (ITEM_IN_PAD * H1 + H1 * H2 + H2 * E + E * 2 * E) + 30 * Bp * E
    bytes_accessed = (Bp * ITEM_IN_PAD * 4 + SLAB_ROWS * SLAB_COLS * 2
                      + VP_ROWS * SLAB_COLS * 4 + Bp * 4)

    const = lambda i: (0, 0)
    out = pl.pallas_call(
        _item_path_kernel,
        out_shape=jax.ShapeDtypeStruct((1, Bp), jnp.float32),
        grid=(grid,),
        in_specs=[
            pl.BlockSpec((block_b, ITEM_IN_PAD), lambda i: (i, 0)),
            pl.BlockSpec((SLAB_ROWS, SLAB_COLS), const),   # weight slab, resident
            pl.BlockSpec((VP_ROWS, SLAB_COLS), const),     # vector params, resident
        ],
        out_specs=pl.BlockSpec((1, block_b), lambda i: (0, i)),
        compiler_params=pltpu.CompilerParams(dimension_semantics=("parallel",)),
        cost_estimate=pl.CostEstimate(flops=flops, transcendentals=2 * Bp,
                                      bytes_accessed=bytes_accessed),
    )(x, kp["ws"], kp["vp"])
    return out[0, :B]


# ------------------- parameter folding / packing (wrapper-side) -------------
def prepare_kernel_params(p):
    def fold_bn(w, b, bn):
        gamma, beta, mean, var = bn[0], bn[1], bn[2], bn[3]
        scale = gamma * jax.lax.rsqrt(var + BN_EPS)
        return w * scale[None, :], (b[0] - mean) * scale + beta

    w1, b1 = fold_bn(p["iW1"], p["ib1"], p["ibn1"])      # (20, 64), (64,)
    w2, b2 = fold_bn(p["iW2"], p["ib2"], p["ibn2"])      # (64, 32), (32,)
    w3, b3 = p["iW3"], p["ib3"][0]                       # (32, 32), (32,)

    # seq-1 MHA collapse + composition of both attention blocks + 1/temperature fold.
    au = p["uWv"] @ p["uWo"]                             # (E, E)
    abu = p["ubv"][0] @ p["uWo"] + p["ubo"][0]           # (E,)
    ai = p["iWv"] @ p["iWo"]
    abi = p["ibv"][0] @ p["iWo"] + p["ibo"][0]
    inv_t = 1.0 / p["temp"][0, 0]
    a_cat = jnp.concatenate([au, (au @ ai) * inv_t], axis=1)        # (E, 2E)
    ab_cat = jnp.concatenate([abu, (abu @ ai + abi) * inv_t])       # (2E,)

    # Single bf16 weight slab (row offsets aligned to 16 for bf16 sublane packing).
    ws = jnp.zeros((SLAB_ROWS, SLAB_COLS), jnp.float32)
    ws = ws.at[R_W1:R_W1 + ITEM_IN_DIM, 0:H1].set(w1)    # rows 20:32 stay 0 (padded feats)
    ws = ws.at[R_W2:R_W2 + H1, 0:H2].set(w2)
    ws = ws.at[R_W3:R_W3 + H2, 0:E].set(w3)
    ws = ws.at[R_AT:R_AT + E, 0:2 * E].set(a_cat)
    ws = ws.astype(jnp.bfloat16)

    vp = jnp.zeros((VP_ROWS, SLAB_COLS), jnp.float32)
    vp = vp.at[0, 0:H1].set(b1)
    vp = vp.at[1, 0:H2].set(b2)
    vp = vp.at[2, 0:E].set(b3)
    vp = vp.at[3, 0:E].set(p["iln"][0])
    vp = vp.at[4, 0:E].set(p["iln"][1])
    vp = vp.at[5, 0:2 * E].set(ab_cat)
    return {"ws": ws, "vp": vp}


# ------------------------------ glue (plain JAX) ----------------------------
def xavier_normal(key, shape):
    fan_out, fan_in = shape[0], shape[1]
    std = (2.0 / (fan_in + fan_out)) ** 0.5
    return std * jax.random.normal(key, shape, dtype=jnp.float32)


def make_params(key):
    ks = iter(jax.random.split(key, 32))
    nk = lambda: next(ks)

    def tower_params(in_dim, prefix):
        h1, h2 = HIDDEN_LAYERS
        d = {}
        # PyTorch Linear weights are [out, in]; store transposed [in, out].
        d[prefix + "W1"] = xavier_normal(nk(), (h1, in_dim)).T
        d[prefix + "b1"] = jnp.zeros((1, h1), jnp.float32)
        d[prefix + "bn1"] = jnp.stack([jnp.ones(h1), jnp.zeros(h1),
                                       jnp.zeros(h1), jnp.ones(h1)]).astype(jnp.float32)
        d[prefix + "W2"] = xavier_normal(nk(), (h2, h1)).T
        d[prefix + "b2"] = jnp.zeros((1, h2), jnp.float32)
        d[prefix + "bn2"] = jnp.stack([jnp.ones(h2), jnp.zeros(h2),
                                       jnp.zeros(h2), jnp.ones(h2)]).astype(jnp.float32)
        d[prefix + "W3"] = xavier_normal(nk(), (EMBEDDING_DIM, h2)).T
        d[prefix + "b3"] = jnp.zeros((1, EMBEDDING_DIM), jnp.float32)
        d[prefix + "ln"] = jnp.stack([jnp.ones(EMBEDDING_DIM),
                                      jnp.zeros(EMBEDDING_DIM)]).astype(jnp.float32)
        return d

    p = {}
    # embedding tables (lookup is gather glue, done in plain JAX)
    p["user_emb"] = {name: xavier_normal(nk(), (v, _emb_dim(v)))
                     for name, v in USER_CAT_DIMS.items()}
    p["item_emb"] = {name: xavier_normal(nk(), (v, _emb_dim(v)))
                     for name, v in ITEM_CAT_DIMS.items()}
    p.update(tower_params(USER_IN_DIM, "u"))
    p.update(tower_params(ITEM_IN_DIM, "i"))
    for prefix in ("u", "i"):          # full MHA params (q/k are dead in the kernel)
        for nm in ("Wq", "Wk", "Wv", "Wo"):
            p[prefix + nm] = xavier_normal(nk(), (E, E)).T
        for nm in ("bq", "bk", "bv", "bo"):
            p[prefix + nm] = jnp.zeros((1, E), jnp.float32)
    p["temp"] = jnp.full((1, 1), TEMPERATURE, jnp.float32)
    return p


def process_features(cat_inputs, emb_tables, numerical):
    embs = [jnp.take(emb_tables[name], cat_inputs[name], axis=0)
            for name in cat_inputs]
    return jnp.concatenate(embs + [numerical], axis=1).astype(jnp.float32)


# Literal pure-JAX reference of the full module math (eval mode): runs BOTH towers
# and the real multi-head q/k/v softmax attention path, all in f32.
def reference_forward(user_feat, item_feat, p):
    def linear(x, wt, b):
        return x @ wt + b

    def bn(x, bnp):
        g, be, m, v = bnp[0], bnp[1], bnp[2], bnp[3]
        return (x - m) * g / jnp.sqrt(v + BN_EPS) + be

    def ln(x, lnp):
        mu = jnp.mean(x, axis=-1, keepdims=True)
        var = jnp.mean((x - mu) ** 2, axis=-1, keepdims=True)
        return (x - mu) / jnp.sqrt(var + LN_EPS) * lnp[0] + lnp[1]

    def l2(x):
        n = jnp.sqrt(jnp.sum(x * x, axis=-1, keepdims=True))
        return x / jnp.maximum(n, L2_EPS)

    def tower(x, pref):
        h = jax.nn.relu(bn(linear(x, p[pref + "W1"], p[pref + "b1"]), p[pref + "bn1"]))
        h = jax.nn.relu(bn(linear(h, p[pref + "W2"], p[pref + "b2"]), p[pref + "bn2"]))
        return ln(linear(h, p[pref + "W3"], p[pref + "b3"]), p[pref + "ln"])

    def mha(q_in, kv_in, pref):
        # batch_first MultiheadAttention with seq_len == 1, 8 heads.
        q = q_in @ p[pref + "Wq"] + p[pref + "bq"][0]
        k = kv_in @ p[pref + "Wk"] + p[pref + "bk"][0]
        v = kv_in @ p[pref + "Wv"] + p[pref + "bv"][0]
        Bb = q.shape[0]
        hd = E // NUM_HEADS
        qh = q.reshape(Bb, NUM_HEADS, hd)
        kh = k.reshape(Bb, NUM_HEADS, hd)
        vh = v.reshape(Bb, NUM_HEADS, hd)
        scores = jnp.sum(qh * kh, axis=-1, keepdims=True) / jnp.sqrt(float(hd))
        attn = jax.nn.softmax(scores, axis=-1)     # single key -> exactly 1
        out = (attn * vh).reshape(Bb, E)
        return out @ p[pref + "Wo"] + p[pref + "bo"][0]

    u_emb = l2(tower(user_feat, "u"))
    i_emb = l2(tower(item_feat, "i"))
    u_att = mha(u_emb, i_emb, "u")      # q = user,  k/v = item
    i_att = mha(i_emb, u_att, "i")      # q = item,  k/v = attended user
    return jnp.sum(u_att * i_att, axis=-1) / p["temp"][0, 0]


if __name__ == "__main__":
    root = jax.random.PRNGKey(0)
    k_param, k_uc1, k_uc2, k_ic1, k_ic2, k_un, k_in = jax.random.split(root, 7)

    params = make_params(k_param)
    kernel_params = prepare_kernel_params(params)

    user_categorical = {
        "age_bucket": jax.random.randint(k_uc1, (BATCH,), 0, USER_CAT_DIMS["age_bucket"]),
        "gender": jax.random.randint(k_uc2, (BATCH,), 0, USER_CAT_DIMS["gender"]),
    }
    item_categorical = {
        "category": jax.random.randint(k_ic1, (BATCH,), 0, ITEM_CAT_DIMS["category"]),
        "brand": jax.random.randint(k_ic2, (BATCH,), 0, ITEM_CAT_DIMS["brand"]),
    }
    user_numerical = jax.random.normal(k_un, (BATCH, USER_NUM_DIM), jnp.float32)
    item_numerical = jax.random.normal(k_in, (BATCH, ITEM_NUM_DIM), jnp.float32)

    user_feat = process_features(user_categorical, params["user_emb"], user_numerical)
    item_feat = process_features(item_categorical, params["item_emb"], item_numerical)

    sims = two_tower_pallas(user_feat, item_feat, kernel_params)
    sims = jax.block_until_ready(sims)

    ref = reference_forward(user_feat, item_feat, params)
    assert sims.shape == (BATCH,)
    assert bool(jnp.all(jnp.isfinite(sims)))
    # Kernel uses bf16 matmul operands (f32 accumulate); per-element atol/rtol is not
    # meaningful where the 32-term dot product cancels, so check the max error against
    # the output scale (5% of max|ref| comfortably bounds bf16 rounding through the
    # 5-matmul chain scaled by 1/temperature = 10).
    err = float(jnp.max(jnp.abs(sims - ref)))
    scale = float(jnp.maximum(jnp.max(jnp.abs(ref)), 1.0))
    assert err <= 5e-2 * scale, (err, scale, sims, ref)

    print("KERNEL_OK")
</pallas_src>

<mosaic_0001>
module attributes {stable_mosaic.version = 11 : i64} {
  func.func @_item_path_kernel(%arg0: i32, %arg1: memref<8x32xf32, #tpu.memory_space<vmem>>, %arg2: memref<160x64xbf16, #tpu.memory_space<vmem>>, %arg3: memref<8x64xf32, #tpu.memory_space<vmem>>, %arg4: memref<1x8xf32, #tpu.memory_space<vmem>>) attributes {dimension_semantics = [#tpu.dimension_semantics<parallel>], iteration_bounds = array<i64: 1>, scalar_prefetch = 0 : i64, scratch_operands = 0 : i64, tpu.core_type = #tpu.core_type<tc>, window_params = [{transform_indices = @transform_0, window_bounds = array<i64: 8, 32>}, {pipeline_mode = #tpu.pipeline_mode<synchronous>, transform_indices = @transform_1, window_bounds = array<i64: 160, 64>}, {pipeline_mode = #tpu.pipeline_mode<synchronous>, transform_indices = @transform_2, window_bounds = array<i64: 8, 64>}, {transform_indices = @transform_3, window_bounds = array<i64: 1, 8>}]} {
    %c0 = arith.constant 0 : index
    %c0_0 = arith.constant 0 : index
    %0 = vector.load %arg1[%c0, %c0_0] : memref<8x32xf32, #tpu.memory_space<vmem>>, vector<8x32xf32>
    %1 = arith.truncf %0 : vector<8x32xf32> to vector<8x32xbf16>
    %c0_1 = arith.constant 0 : index
    %c0_2 = arith.constant 0 : index
    %2 = vector.load %arg2[%c0_1, %c0_2] : memref<160x64xbf16, #tpu.memory_space<vmem>>, vector<32x64xbf16>
    %cst = arith.constant dense<0.000000e+00> : vector<8x64xf32>
    %3 = tpu.matmul %1, %2, %cst {dimension_numbers = #tpu.dot_dimension_numbers<[1], [0], [0], [1], [0, 0, 1, 1], [], []>} : vector<8x32xbf16>, vector<32x64xbf16>, vector<8x64xf32> -> vector<8x64xf32>
    %c0_3 = arith.constant 0 : index
    %c0_4 = arith.constant 0 : index
    %4 = vector.load %arg3[%c0_3, %c0_4] : memref<8x64xf32, #tpu.memory_space<vmem>>, vector<1x64xf32>
    %5 = vector.broadcast %4 : vector<1x64xf32> to vector<8x64xf32>
    %6 = arith.addf %3, %5 : vector<8x64xf32>
    %cst_5 = arith.constant 0.000000e+00 : f32
    %7 = vector.broadcast %cst_5 : f32 to vector<8x64xf32>
    %8 = arith.maximumf %6, %7 : vector<8x64xf32>
    %9 = arith.truncf %8 : vector<8x64xf32> to vector<8x64xbf16>
    %c32 = arith.constant 32 : index
    %c0_6 = arith.constant 0 : index
    %10 = vector.load %arg2[%c32, %c0_6] : memref<160x64xbf16, #tpu.memory_space<vmem>>, vector<64x32xbf16>
    %cst_7 = arith.constant dense<0.000000e+00> : vector<8x32xf32>
    %11 = tpu.matmul %9, %10, %cst_7 {dimension_numbers = #tpu.dot_dimension_numbers<[1], [0], [0], [1], [0, 0, 1, 1], [], []>} : vector<8x64xbf16>, vector<64x32xbf16>, vector<8x32xf32> -> vector<8x32xf32>
    %c1 = arith.constant 1 : index
    %c0_8 = arith.constant 0 : index
    %12 = vector.load %arg3[%c1, %c0_8] : memref<8x64xf32, #tpu.memory_space<vmem>>, vector<1x32xf32>
    %13 = vector.broadcast %12 : vector<1x32xf32> to vector<8x32xf32>
    %14 = arith.addf %11, %13 : vector<8x32xf32>
    %cst_9 = arith.constant 0.000000e+00 : f32
    %15 = vector.broadcast %cst_9 : f32 to vector<8x32xf32>
    %16 = arith.maximumf %14, %15 : vector<8x32xf32>
    %17 = arith.truncf %16 : vector<8x32xf32> to vector<8x32xbf16>
    %c96 = arith.constant 96 : index
    %c0_10 = arith.constant 0 : index
    %18 = vector.load %arg2[%c96, %c0_10] : memref<160x64xbf16, #tpu.memory_space<vmem>>, vector<32x32xbf16>
    %cst_11 = arith.constant dense<0.000000e+00> : vector<8x32xf32>
    %19 = tpu.matmul %17, %18, %cst_11 {dimension_numbers = #tpu.dot_dimension_numbers<[1], [0], [0], [1], [0, 0, 1, 1], [], []>} : vector<8x32xbf16>, vector<32x32xbf16>, vector<8x32xf32> -> vector<8x32xf32>
    %c2 = arith.constant 2 : index
    %c0_12 = arith.constant 0 : index
    %20 = vector.load %arg3[%c2, %c0_12] : memref<8x64xf32, #tpu.memory_space<vmem>>, vector<1x32xf32>
    %21 = vector.broadcast %20 : vector<1x32xf32> to vector<8x32xf32>
    %22 = arith.addf %19, %21 : vector<8x32xf32>
    %cst_13 = arith.constant dense<0.000000e+00> : vector<8xf32>
    %23 = vector.multi_reduction <add>, %22, %cst_13 [1] : vector<8x32xf32> to vector<8xf32>
    %24 = vector.shape_cast %23 : vector<8xf32> to vector<8x1xf32>
    %cst_14 = arith.constant 3.200000e+01 : f32
    %25 = vector.broadcast %cst_14 : f32 to vector<8x1xf32>
    %26 = arith.divf %24, %25 : vector<8x1xf32>
    %27 = vector.broadcast %26 : vector<8x1xf32> to vector<8x32xf32>
    %28 = arith.subf %22, %27 : vector<8x32xf32>
    %29 = arith.mulf %28, %28 : vector<8x32xf32>
    %cst_15 = arith.constant dense<0.000000e+00> : vector<8xf32>
    %30 = vector.multi_reduction <add>, %29, %cst_15 [1] : vector<8x32xf32> to vector<8xf32>
    %31 = vector.shape_cast %30 : vector<8xf32> to vector<8x1xf32>
    %cst_16 = arith.constant 3.200000e+01 : f32
    %32 = vector.broadcast %cst_16 : f32 to vector<8x1xf32>
    %33 = arith.divf %31, %32 : vector<8x1xf32>
    %cst_17 = arith.constant 9.99999974E-6 : f32
    %34 = vector.broadcast %cst_17 : f32 to vector<8x1xf32>
    %35 = arith.addf %33, %34 : vector<8x1xf32>
    %36 = math.rsqrt %35 : vector<8x1xf32>
    %37 = vector.broadcast %36 : vector<8x1xf32> to vector<8x32xf32>
    %38 = arith.mulf %28, %37 : vector<8x32xf32>
    %c3 = arith.constant 3 : index
    %c0_18 = arith.constant 0 : index
    %39 = vector.load %arg3[%c3, %c0_18] : memref<8x64xf32, #tpu.memory_space<vmem>>, vector<1x32xf32>
    %40 = vector.broadcast %39 : vector<1x32xf32> to vector<8x32xf32>
    %41 = arith.mulf %38, %40 : vector<8x32xf32>
    %c4 = arith.constant 4 : index
    %c0_19 = arith.constant 0 : index
    %42 = vector.load %arg3[%c4, %c0_19] : memref<8x64xf32, #tpu.memory_space<vmem>>, vector<1x32xf32>
    %43 = vector.broadcast %42 : vector<1x32xf32> to vector<8x32xf32>
    %44 = arith.addf %41, %43 : vector<8x32xf32>
    %45 = arith.mulf %44, %44 : vector<8x32xf32>
    %cst_20 = arith.constant dense<0.000000e+00> : vector<8xf32>
    %46 = vector.multi_reduction <add>, %45, %cst_20 [1] : vector<8x32xf32> to vector<8xf32>
    %47 = vector.shape_cast %46 : vector<8xf32> to vector<8x1xf32>
    %cst_21 = arith.constant 1.000000e-24 : f32
    %48 = vector.broadcast %cst_21 : f32 to vector<8x1xf32>
    %49 = arith.maximumf %47, %48 : vector<8x1xf32>
    %50 = math.rsqrt %49 : vector<8x1xf32>
    %51 = vector.broadcast %50 : vector<8x1xf32> to vector<8x32xf32>
    %52 = arith.mulf %44, %51 : vector<8x32xf32>
    %53 = arith.truncf %52 : vector<8x32xf32> to vector<8x32xbf16>
    %c128 = arith.constant 128 : index
    %c0_22 = arith.constant 0 : index
    %54 = vector.load %arg2[%c128, %c0_22] : memref<160x64xbf16, #tpu.memory_space<vmem>>, vector<32x64xbf16>
    %cst_23 = arith.constant dense<0.000000e+00> : vector<8x64xf32>
    %55 = tpu.matmul %53, %54, %cst_23 {dimension_numbers = #tpu.dot_dimension_numbers<[1], [0], [0], [1], [0, 0, 1, 1], [], []>} : vector<8x32xbf16>, vector<32x64xbf16>, vector<8x64xf32> -> vector<8x64xf32>
    %c5 = arith.constant 5 : index
    %c0_24 = arith.constant 0 : index
    %56 = vector.load %arg3[%c5, %c0_24] : memref<8x64xf32, #tpu.memory_space<vmem>>, vector<1x64xf32>
    %57 = vector.broadcast %56 : vector<1x64xf32> to vector<8x64xf32>
    %58 = arith.addf %55, %57 : vector<8x64xf32>
    %59 = vector.extract_strided_slice %58 {offsets = [0, 0], sizes = [8, 32], strides = [1, 1]} : vector<8x64xf32> to vector<8x32xf32>
    %60 = vector.extract_strided_slice %58 {offsets = [0, 32], sizes = [8, 32], strides = [1, 1]} : vector<8x64xf32> to vector<8x32xf32>
    %61 = arith.mulf %59, %60 : vector<8x32xf32>
    %cst_25 = arith.constant dense<0.000000e+00> : vector<8xf32>
    %62 = vector.multi_reduction <add>, %61, %cst_25 [1] : vector<8x32xf32> to vector<8xf32>
    %63 = vector.shape_cast %62 : vector<8xf32> to vector<1x8xf32>
    %c0_26 = arith.constant 0 : index
    %c0_27 = arith.constant 0 : index
    %64 = vector.load %arg4[%c0_26, %c0_27] : memref<1x8xf32, #tpu.memory_space<vmem>>, vector<1x8xf32>
    tpu.vector_store %arg4[%c0_26, %c0_27], %63 {strides = array<i32>} : memref<1x8xf32, #tpu.memory_space<vmem>>, vector<1x8xf32>,
    return
  }
  func.func @transform_0(%arg0: i32) -> (i32, i32) {
    %c0_i32 = arith.constant 0 : i32
    %c0_i32_0 = arith.constant 0 : i32
    return %arg0, %c0_i32 : i32, i32
  }
  func.func @transform_1(%arg0: i32) -> (i32, i32) {
    %c0_i32 = arith.constant 0 : i32
    %c0_i32_0 = arith.constant 0 : i32
    %c0_i32_1 = arith.constant 0 : i32
    return %c0_i32, %c0_i32_0 : i32, i32
  }
  func.func @transform_2(%arg0: i32) -> (i32, i32) {
    %c0_i32 = arith.constant 0 : i32
    %c0_i32_0 = arith.constant 0 : i32
    %c0_i32_1 = arith.constant 0 : i32
    return %c0_i32, %c0_i32_0 : i32, i32
  }
  func.func @transform_3(%arg0: i32) -> (i32, i32) {
    %c0_i32 = arith.constant 0 : i32
    %c0_i32_0 = arith.constant 0 : i32
    return %c0_i32, %arg0 : i32, i32
  }
}

</mosaic_0001>

<llo_original>
// kernel: tpu_custom_call.1
$region0: #{tpu_custom_call.1}
  #allocation0 [shape = 'u32[]', space=smem, size = 0x4, offset = 0x4, fixed_abs, tag = 'smem constant byte address 0x4 - core index']
  #allocation1 [shape = 'u32[144,128]{1,0:T(1,128)}', space=vmem, size = 0x12000, scoped, tag = 'internal scratch']
  %s0 = inlined_call_operand.vmem [shape: f32[8,32], index: 0, kind: input, shape index: {}]
  %s1 = inlined_call_operand.vmem [shape: bf16[160,64], index: 1, kind: input, shape index: {}]
  %s2 = inlined_call_operand.vmem [shape: f32[8,64], index: 2, kind: input, shape index: {}]
  %s3 = inlined_call_operand.hbm [shape: f32[1,8], index: 3, kind: output, shape index: {}]
  %s4 = sld [smem:[#allocation0]]
  $region22: #{tpu_custom_call.1} parent=0
    _
  %s6 = ssub.s32 1, %s4
  %s7 = scalar_select 0, %s6, %s4
  $region1: #{tpu_custom_call.1} parent=0
    #allocation2 [shape = 'u8[512]{0}', space=vmem, size = 0x400, scoped, tag = 'output window, operand 0, single buffered']
    #allocation3 [shape = 's32[1]{0}', space=sflag, size = 0x4, scoped, tag = 'scoped memory for tpu_custom_call.1']
    %8 = vsyncpa [#allocation3], 0
    // Predicated region
    $region2: #{tpu_custom_call.1} parent=1 // pred_check
      _
    $region3: #{tpu_custom_call.1} parent=1 // pred_check_branch
      %10 = sbr.rel (0) target = $region5
    $region4: #{tpu_custom_call.1} parent=1 // pred_region
      _
    $region5: #{tpu_custom_call.1} parent=1 // pred_fallthru
      _
    // Predicated region
    $region6: #{tpu_custom_call.1} parent=1 // pred_check
      _
    $region7: #{tpu_custom_call.1} parent=1 // pred_check_branch
      %12 = sbr.rel (0) target = $region9
    $region8: #{tpu_custom_call.1} parent=1 // pred_region
      _
    $region9: #{tpu_custom_call.1} parent=1 // pred_fallthru
      _
    // Predicated region
    $region10: #{tpu_custom_call.1} parent=1 // pred_check
      _
    $region11: #{tpu_custom_call.1} parent=1 // pred_check_branch
      %14 = sbr.rel (0) target = $region13
    $region12: #{tpu_custom_call.1} parent=1 // pred_region
      _
    $region13: #{tpu_custom_call.1} parent=1 // pred_fallthru
      _
    %v16 = vld [vmem:[%s0] sm:$0xff]
    %v17 = vpack.c.bf16 %v16, %v16
    %v18 = vld [vmem:[%s1] sm:$0xf]
    %v19 = vld [vmem:[%s1 + $0x4] sm:$0xf]
    %v20 = vld [vmem:[%s1 + $0x8] sm:$0xf]
    %v21 = vld [vmem:[%s1 + $0xc] sm:$0xf]
    %v22 = vld [vmem:[%s2] sm:$0x1]
    %v23 = vlaneseq
    %v24 = vshrl.u32 %v23, 7
    %v25 = vsub.s32 0, %v24
    %v26 = vrot.slane %v22, %v25
    %v31 = vunpack.c.l.b16 %v18
    %v32 = vunpack.c.l.b16 %v19
    %v33 = vunpack.c.l.b16 %v20
    %v34 = vunpack.c.l.b16 %v21
    %v35 = vpack.c.b16 %v32, %v31
    %v36 = vpack.c.b16 %v34, %v33
    %vm39 = vcmask 261120
    %v41 = vsel %vm39, %v17, 0
    %43 = vmatprep.subr.bf16.mxu0 0
    %44 = vmatpush1.bf16.msra.mxu0 %v35
    %45 = vmatprep.subr.bf16.mxu0 0
    %46 = vmatpush1.bf16.msra.mxu0 %v36
    %47 = vmatprep.subr.bf16.mxu0 0
    %48 = vmatpush1.bf16.msra.mxu0 0
    %49 = vmatprep.subr.bf16.mxu0 0
    %50 = vmatpush1.bf16.msra.mxu0 0
    %51 = vmatprep.subr.bf16.mxu0 0
    %52 = vmatpush1.bf16.msra.mxu0 0
    %53 = vmatprep.subr.bf16.mxu0 0
    %54 = vmatpush1.bf16.msra.mxu0 0
    %55 = vmatprep.subr.bf16.mxu0 0
    %56 = vmatpush1.bf16.msra.mxu0 0
    %57 = vmatprep.subr.bf16.mxu0 0
    %58 = vmatpush1.bf16.msra.mxu0 0
    %59 = vmatprep.subr.bf16.mxu0 0
    %60 = vmatpush1.bf16.msra.mxu0 0
    %61 = vmatprep.subr.bf16.mxu0 0
    %62 = vmatpush1.bf16.msra.mxu0 0
    %63 = vmatprep.subr.bf16.mxu0 0
    %64 = vmatpush1.bf16.msra.mxu0 0
    %65 = vmatprep.subr.bf16.mxu0 0
    %66 = vmatpush1.bf16.msra.mxu0 0
    %67 = vmatprep.subr.bf16.mxu0 0
    %68 = vmatpush1.bf16.msra.mxu0 0
    %69 = vmatprep.subr.bf16.mxu0 0
    %70 = vmatpush1.bf16.msra.mxu0 0
    %71 = vmatprep.subr.bf16.mxu0 0
    %72 = vmatpush1.bf16.msra.mxu0 0
    %73 = vmatprep.subr.bf16.mxu0 0
    %74 = vmatpush1.bf16.msra.mxu0 0
    %75 = vmatprep.mubr.bf16.mxu0 0
    %76 = vmatmul.mubr.bf16.gmra.mrb[0].mxu0 %v41
    %v77 = vpop.f32.mrb[0].mxu0
    %v78 = vadd.f32 %v26, %v77
    %v79 = vpop.f32.mrb[0].mxu0
    %v80 = vpop.f32.mrb[0].mxu0
    %v81 = vpop.f32.mrb[0].mxu0
    %82 = vdwg.mxu0
    %v83 = vmax.f32 %v78, 0.0
    %v84 = vpack.c.bf16 %v83, %v83
    %v85 = vld [vmem:[%s1 + $0x10] sm:$0xf]
    %v86 = vld [vmem:[%s1 + $0x14] sm:$0xf]
    %v87 = vld [vmem:[%s1 + $0x18] sm:$0xf]
    %v88 = vld [vmem:[%s1 + $0x1c] sm:$0xf]
    %v89 = vld [vmem:[%s1 + $0x20] sm:$0xf]
    %v90 = vld [vmem:[%s1 + $0x24] sm:$0xf]
    %v91 = vld [vmem:[%s1 + $0x28] sm:$0xf]
    %v92 = vld [vmem:[%s1 + $0x2c] sm:$0xf]
    %v93 = vld [vmem:[%s2 + $0x1] sm:$0x1]
    %v94 = vlaneseq
    %v95 = vshrl.u32 %v94, 7
    %v96 = vsub.s32 0, %v95
    %v97 = vrot.slane %v93, %v96
    %v106 = vunpack.c.l.b16 %v85
    %v107 = vunpack.c.l.b16 %v86
    %v108 = vunpack.c.l.b16 %v87
    %v109 = vunpack.c.l.b16 %v88
    %v110 = vunpack.c.l.b16 %v89
    %v111 = vunpack.c.l.b16 %v90
    %v112 = vunpack.c.l.b16 %v91
    %v113 = vunpack.c.l.b16 %v92
    %v114 = vpack.c.b16 %v107, %v106
    %v115 = vpack.c.b16 %v109, %v108
    %v116 = vpack.c.b16 %v111, %v110
    %v117 = vpack.c.b16 %v113, %v112
    %vm122 = vcmask 523264
    %v124 = vsel %vm122, %v84, 0
    %126 = vmatprep.subr.bf16.mxu0 0
    %127 = vmatpush1.bf16.msra.mxu0 %v114
    %128 = vmatprep.subr.bf16.mxu0 0
    %129 = vmatpush1.bf16.msra.mxu0 %v115
    %130 = vmatprep.subr.bf16.mxu0 0
    %131 = vmatpush1.bf16.msra.mxu0 %v116
    %132 = vmatprep.subr.bf16.mxu0 0
    %133 = vmatpush1.bf16.msra.mxu0 %v117
    %134 = vmatprep.subr.bf16.mxu0 0
    %135 = vmatpush1.bf16.msra.mxu0 0
    %136 = vmatprep.subr.bf16.mxu0 0
    %137 = vmatpush1.bf16.msra.mxu0 0
    %138 = vmatprep.subr.bf16.mxu0 0
    %139 = vmatpush1.bf16.msra.mxu0 0
    %140 = vmatprep.subr.bf16.mxu0 0
    %141 = vmatpush1.bf16.msra.mxu0 0
    %142 = vmatprep.subr.bf16.mxu0 0
    %143 = vmatpush1.bf16.msra.mxu0 0
    %144 = vmatprep.subr.bf16.mxu0 0
    %145 = vmatpush1.bf16.msra.mxu0 0
    %146 = vmatprep.subr.bf16.mxu0 0
    %147 = vmatpush1.bf16.msra.mxu0 0
    %148 = vmatprep.subr.bf16.mxu0 0
    %149 = vmatpush1.bf16.msra.mxu0 0
    %150 = vmatprep.subr.bf16.mxu0 0
    %151 = vmatpush1.bf16.msra.mxu0 0
    %152 = vmatprep.subr.bf16.mxu0 0
    %153 = vmatpush1.bf16.msra.mxu0 0
    %154 = vmatprep.subr.bf16.mxu0 0
    %155 = vmatpush1.bf16.msra.mxu0 0
    %156 = vmatprep.subr.bf16.mxu0 0
    %157 = vmatpush1.bf16.msra.mxu0 0
    %158 = vmatprep.mubr.bf16.mxu0 0
    %159 = vmatmul.mubr.bf16.gmra.mrb[0].mxu0 %v124
    %v160 = vpop.f32.mrb[0].mxu0
    %v161 = vadd.f32 %v97, %v160
    %v162 = vpop.f32.mrb[0].mxu0
    %v163 = vpop.f32.mrb[0].mxu0
    %v164 = vpop.f32.mrb[0].mxu0
    %165 = vdwg.mxu0
    %v166 = vmax.f32 %v161, 0.0
    %v167 = vpack.c.bf16 %v166, %v166
    %v168 = vld [vmem:[%s1 + $0x30] sm:$0xf]
    %v169 = vld [vmem:[%s1 + $0x34] sm:$0xf]
    %v170 = vld [vmem:[%s1 + $0x38] sm:$0xf]
    %v171 = vld [vmem:[%s1 + $0x3c] sm:$0xf]
    %v172 = vld [vmem:[%s2 + $0x2] sm:$0x1]
    %v173 = vlaneseq
    %v174 = vshrl.u32 %v173, 7
    %v175 = vsub.s32 0, %v174
    %v176 = vrot.slane %v172, %v175
    %v181 = vunpack.c.l.b16 %v168
    %v182 = vunpack.c.l.b16 %v169
    %v183 = vunpack.c.l.b16 %v170
    %v184 = vunpack.c.l.b16 %v171
    %v185 = vpack.c.b16 %v182, %v181
    %v186 = vpack.c.b16 %v184, %v183
    %v190 = vsel %vm39, %v167, 0
    %192 = vmatprep.subr.bf16.mxu0 0
    %193 = vmatpush1.bf16.msra.mxu0 %v185
    %194 = vmatprep.subr.bf16.mxu0 0
    %195 = vmatpush1.bf16.msra.mxu0 %v186
    %196 = vmatprep.subr.bf16.mxu0 0
    %197 = vmatpush1.bf16.msra.mxu0 0
    %198 = vmatprep.subr.bf16.mxu0 0
    %199 = vmatpush1.bf16.msra.mxu0 0
    %200 = vmatprep.subr.bf16.mxu0 0
    %201 = vmatpush1.bf16.msra.mxu0 0
    %202 = vmatprep.subr.bf16.mxu0 0
    %203 = vmatpush1.bf16.msra.mxu0 0
    %204 = vmatprep.subr.bf16.mxu0 0
    %205 = vmatpush1.bf16.msra.mxu0 0
    %206 = vmatprep.subr.bf16.mxu0 0
    %207 = vmatpush1.bf16.msra.mxu0 0
    %208 = vmatprep.subr.bf16.mxu0 0
    %209 = vmatpush1.bf16.msra.mxu0 0
    %210 = vmatprep.subr.bf16.mxu0 0
    %211 = vmatpush1.bf16.msra.mxu0 0
    %212 = vmatprep.subr.bf16.mxu0 0
    %213 = vmatpush1.bf16.msra.mxu0 0
    %214 = vmatprep.subr.bf16.mxu0 0
    %215 = vmatpush1.bf16.msra.mxu0 0
    %216 = vmatprep.subr.bf16.mxu0 0
    %217 = vmatpush1.bf16.msra.mxu0 0
    %218 = vmatprep.subr.bf16.mxu0 0
    %219 = vmatpush1.bf16.msra.mxu0 0
    %220 = vmatprep.subr.bf16.mxu0 0
    %221 = vmatpush1.bf16.msra.mxu0 0
    %222 = vmatprep.subr.bf16.mxu0 0
    %223 = vmatpush1.bf16.msra.mxu0 0
    %224 = vmatprep.mubr.bf16.mxu0 0
    %225 = vmatmul.mubr.bf16.gmra.mrb[0].mxu0 %v190
    %v226 = vpop.f32.mrb[0].mxu0
    %v227 = vadd.f32 %v176, %v226
    %v228 = vpop.f32.mrb[0].mxu0
    %v229 = vpop.f32.mrb[0].mxu0
    %v230 = vpop.f32.mrb[0].mxu0
    %231 = vdwg.mxu0
    %v232 = vsel %vm39, %v227, 0.0
    %233 = vadd.xlane.f32.xlu0 %v232
    %v234 = vpop.xlane.xlu0 %233
    %v235 = vrcp.pop 32.0
    %v236 = vmul.f32 %v234, %v235
    %v237 = vsub.f32 %v227, %v236
    %v238 = vmul.f32 %v237, %v237
    %v239 = vsel %vm39, %v238, 0.0
    %240 = vadd.xlane.f32.xlu0 %v239
    %v241 = vpop.xlane.xlu0 %240
    %v242 = vmul.f32 %v241, %v235
    %v243 = vadd.f32 %v242, 1e-05
    %v244 = vrsqrt.pop %v243
    %v245 = vmul.f32 %v237, %v244
    %v246 = vld [vmem:[%s2 + $0x3] sm:$0x1]
    %v247 = vlaneseq
    %v248 = vshrl.u32 %v247, 7
    %v249 = vsub.s32 0, %v248
    %v250 = vrot.slane %v246, %v249
    %v251 = vmul.f32 %v245, %v250
    %v252 = vld [vmem:[%s2 + $0x4] sm:$0x1]
    %v253 = vlaneseq
    %v254 = vshrl.u32 %v253, 7
    %v255 = vsub.s32 0, %v254
    %v256 = vrot.slane %v252, %v255
    %v257 = vadd.f32 %v251, %v256
    %v258 = vmul.f32 %v257, %v257
    %v259 = vsel %vm39, %v258, 0.0
    %260 = vadd.xlane.f32.xlu0 %v259
    %v261 = vpop.xlane.xlu0 %260
    %v262 = vmax.f32 %v261, 1e-24
    %v263 = vrsqrt.pop %v262
    %v264 = vmul.f32 %v257, %v263
    %v265 = vpack.c.bf16 %v264, %v264
    %v266 = vld [vmem:[%s1 + $0x40] sm:$0xf]
    %v267 = vld [vmem:[%s1 + $0x44] sm:$0xf]
    %v268 = vld [vmem:[%s1 + $0x48] sm:$0xf]
    %v269 = vld [vmem:[%s1 + $0x4c] sm:$0xf]
    %v270 = vld [vmem:[%s2 + $0x5] sm:$0x1]
    %v271 = vlaneseq
    %v272 = vshrl.u32 %v271, 7
    %v273 = vsub.s32 0, %v272
    %v274 = vrot.slane %v270, %v273
    %v279 = vunpack.c.l.b16 %v266
    %v280 = vunpack.c.l.b16 %v267
    %v281 = vunpack.c.l.b16 %v268
    %v282 = vunpack.c.l.b16 %v269
    %v283 = vpack.c.b16 %v280, %v279
    %v284 = vpack.c.b16 %v282, %v281
    %v288 = vsel %vm39, %v265, 0
    %290 = vmatprep.subr.bf16.mxu0 0
    %291 = vmatpush1.bf16.msra.mxu0 %v283
    %292 = vmatprep.subr.bf16.mxu0 0
    %293 = vmatpush1.bf16.msra.mxu0 %v284
    %294 = vmatprep.subr.bf16.mxu0 0
    %295 = vmatpush1.bf16.msra.mxu0 0
    %296 = vmatprep.subr.bf16.mxu0 0
    %297 = vmatpush1.bf16.msra.mxu0 0
    %298 = vmatprep.subr.bf16.mxu0 0
    %299 = vmatpush1.bf16.msra.mxu0 0
    %300 = vmatprep.subr.bf16.mxu0 0
    %301 = vmatpush1.bf16.msra.mxu0 0
    %302 = vmatprep.subr.bf16.mxu0 0
    %303 = vmatpush1.bf16.msra.mxu0 0
    %304 = vmatprep.subr.bf16.mxu0 0
    %305 = vmatpush1.bf16.msra.mxu0 0
    %306 = vmatprep.subr.bf16.mxu0 0
    %307 = vmatpush1.bf16.msra.mxu0 0
    %308 = vmatprep.subr.bf16.mxu0 0
    %309 = vmatpush1.bf16.msra.mxu0 0
    %310 = vmatprep.subr.bf16.mxu0 0
    %311 = vmatpush1.bf16.msra.mxu0 0
    %312 = vmatprep.subr.bf16.mxu0 0
    %313 = vmatpush1.bf16.msra.mxu0 0
    %314 = vmatprep.subr.bf16.mxu0 0
    %315 = vmatpush1.bf16.msra.mxu0 0
    %316 = vmatprep.subr.bf16.mxu0 0
    %317 = vmatpush1.bf16.msra.mxu0 0
    %318 = vmatprep.subr.bf16.mxu0 0
    %319 = vmatpush1.bf16.msra.mxu0 0
    %320 = vmatprep.subr.bf16.mxu0 0
    %321 = vmatpush1.bf16.msra.mxu0 0
    %322 = vmatprep.mubr.bf16.mxu0 0
    %323 = vmatmul.mubr.bf16.gmra.mrb[0].mxu0 %v288
    %v324 = vpop.f32.mrb[0].mxu0
    %v325 = vadd.f32 %v274, %v324
    %v326 = vpop.f32.mrb[0].mxu0
    %v327 = vpop.f32.mrb[0].mxu0
    %v328 = vpop.f32.mrb[0].mxu0
    %329 = vdwg.mxu0
    %331 = vrot.lane.b32.xlu0 %v325, 96
    %v332 = vpop.permute.xlu0 %331
    %v334 = vmul.f32 %v325, %v332
    %v335 = vsel %vm39, %v334, 0.0
    %336 = vadd.xlane.f32.xlu0 %v335
    %v337 = vpop.xlane.xlu0 %336
    %v339 = vlaneseq
    %v340 = vand.u32 %v339, 127
    %v341 = vlaneseq
    %v342 = vshrl.u32 %v341, 7
    %v343 = vsub.s32 %v340, %v342
    %v344 = vrot.slane %v337, %v343
    %vm346 = vcmask 57344
    %347 = vst.msk [vmem:[#allocation2] sm:$0x1] %vm346, %v344
    // Predicated region
    $region14: #{tpu_custom_call.1} parent=1 // pred_check
      _
    $region15: #{tpu_custom_call.1} parent=1 // pred_check_branch
      %349 = sbr.rel (0) target = $region17
    $region16: #{tpu_custom_call.1} parent=1 // pred_region
      %s351 = ssub.s32 16, 16
      %352 = vsyncadd [#allocation3], %s351
      %s354 = sshll.u32 [#allocation2], 4
      %s355 = int_to_ptr.vmem [resolvable:$true] %s354
      %357 = dma.vmem_to_hbm [thread:$0]  %s355, 16, %s3, [#allocation3]
    $region17: #{tpu_custom_call.1} parent=1 // pred_fallthru
      _
    // Predicated region
    $region18: #{tpu_custom_call.1} parent=1 // pred_check
      _
    $region19: #{tpu_custom_call.1} parent=1 // pred_check_branch
      %359 = sbr.rel (0) target = $region21
    $region20: #{tpu_custom_call.1} parent=1 // pred_region
      %360 = dma.done [#allocation3], 16
    $region21: #{tpu_custom_call.1} parent=1 // pred_fallthru
      _
    %361 = vsyncpa [#allocation3], 1

</llo_original>
